<compile_context>
chip_gen: v5e
topology: v5e:2x2
jax: 0.10.0
libtpu: 0.0.40
codegen_flags: <defaults>
</compile_context>

<pallas_src>
import jax
import jax.numpy as jnp
from jax import lax
from jax.experimental import pallas as pl
from jax.experimental.pallas import tpu as pltpu


def _round_up(x, m):
    return ((x + m - 1) // m) * m


def _mlp_kernel(x_ref, w1_ref, b1_ref, w2_ref, b2_ref, o_ref):
    # x_ref: (tm, Kp)   w1_ref: (Hp, Kp)  b1_ref: (1, Hp)
    # w2_ref: (Np, Hp)  b2_ref: (1, Np)   o_ref: (tm, Np)
    # Layer 1: contract x[., K] against W1[H, K] along K (PyTorch layout,
    # no transpose needed).
    h = lax.dot_general(
        x_ref[...], w1_ref[...],
        dimension_numbers=(((1,), (1,)), ((), ())),
        preferred_element_type=jnp.float32)
    h = h + b1_ref[...]                       # bias broadcast (1, Hp)
    h = jnp.where(h > 0, h, 0.2 * h)          # LeakyReLU(0.2) on the VPU
    # Layer 2.
    y = lax.dot_general(
        h, w2_ref[...],
        dimension_numbers=(((1,), (1,)), ((), ())),
        preferred_element_type=jnp.float32)
    o_ref[...] = (y + b2_ref[...]).astype(o_ref.dtype)


def mlp_forward(x, w1, b1, w2, b2, *, tm=128):
    """Fused MLP: (x @ w1.T + b1) -> LeakyReLU(0.2) -> (@ w2.T + b2).

    x:  [M, K]  float32
    w1: [H, K]  float32 (PyTorch nn.Linear layout, H = K // 2)
    b1: [H]     float32
    w2: [N, H]  float32
    b2: [N]     float32
    returns [M, N] float32
    """
    M, K = x.shape
    H = w1.shape[0]
    N = w2.shape[0]

    # Lane-dense padding of all feature dims to multiples of 128.
    Kp, Hp, Np = (_round_up(d, 128) for d in (K, H, N))
    xp = jnp.pad(x, ((0, 0), (0, Kp - K)))
    w1p = jnp.pad(w1, ((0, Hp - H), (0, Kp - K)))
    b1p = jnp.pad(b1, (0, Hp - H)).reshape(1, Hp)
    w2p = jnp.pad(w2, ((0, Np - N), (0, Hp - H)))
    b2p = jnp.pad(b2, (0, Np - N)).reshape(1, Np)

    # Row tile: as large as fits (cap tm), clamped for tiny batches; keep at
    # least 2 grid steps when possible so v7x's two TensorCores both work.
    tm_eff = min(tm, _round_up(M, 8))
    if pl.cdiv(M, tm_eff) == 1 and M >= 16:
        tm_eff = _round_up(pl.cdiv(M, 2), 8)
    grid = (pl.cdiv(M, tm_eff),)

    flops = 2 * M * (Hp * Kp + Np * Hp)
    bytes_accessed = 4 * (M * Kp + Hp * Kp + Hp + Np * Hp + Np + M * Np)
    # Per-step working set: double-buffered x/out tiles + resident weights.
    work_bytes = 4 * (2 * tm_eff * (Kp + Np) + Hp * Kp + Np * Hp + Hp + Np)
    vmem_limit = int(min(max(32 * 1024 * 1024, 2 * work_bytes),
                         64 * 1024 * 1024))

    out_padded = pl.pallas_call(
        _mlp_kernel,
        out_shape=jax.ShapeDtypeStruct((M, Np), x.dtype),
        grid_spec=pltpu.PrefetchScalarGridSpec(
            num_scalar_prefetch=0,
            grid=grid,
            in_specs=[
                pl.BlockSpec((tm_eff, Kp), lambda i: (i, 0)),  # x row tile
                pl.BlockSpec((Hp, Kp), lambda i: (0, 0)),      # W1 resident
                pl.BlockSpec((1, Hp), lambda i: (0, 0)),       # b1
                pl.BlockSpec((Np, Hp), lambda i: (0, 0)),      # W2 resident
                pl.BlockSpec((1, Np), lambda i: (0, 0)),       # b2
            ],
            out_specs=pl.BlockSpec((tm_eff, Np), lambda i: (i, 0)),
        ),
        compiler_params=pltpu.CompilerParams(
            dimension_semantics=("parallel",),
            vmem_limit_bytes=vmem_limit,
        ),
        cost_estimate=pl.CostEstimate(
            flops=flops, transcendentals=0, bytes_accessed=bytes_accessed),
    )(xp, w1p, b1p, w2p, b2p)

    return out_padded[:, :N]


if __name__ == "__main__":
    key = jax.random.PRNGKey(0)
    k_x, k_w1, k_b1, k_w2, k_b2 = jax.random.split(key, 5)

    batch = 32
    input_dim = 64
    hidden_dim = input_dim // 2          # matches nn.Linear(input_dim, input_dim // 2)
    output_dim = 48

    x = jax.random.normal(k_x, (batch, input_dim), dtype=jnp.float32)
    # Deterministic param init (uniform bound shaped like nn.Linear's default).
    bound1 = 1.0 / jnp.sqrt(input_dim)
    w1 = jax.random.uniform(k_w1, (hidden_dim, input_dim),
                            minval=-bound1, maxval=bound1, dtype=jnp.float32)
    b1 = jax.random.uniform(k_b1, (hidden_dim,),
                            minval=-bound1, maxval=bound1, dtype=jnp.float32)
    bound2 = 1.0 / jnp.sqrt(hidden_dim)
    w2 = jax.random.uniform(k_w2, (output_dim, hidden_dim),
                            minval=-bound2, maxval=bound2, dtype=jnp.float32)
    b2 = jax.random.uniform(k_b2, (output_dim,),
                            minval=-bound2, maxval=bound2, dtype=jnp.float32)

    out = mlp_forward(x, w1, b1, w2, b2)
    out = jax.block_until_ready(out)

    # Pure-JAX reference: Linear -> LeakyReLU(0.2) -> Linear.
    h_ref = x @ w1.T + b1
    h_ref = jnp.where(h_ref > 0, h_ref, 0.2 * h_ref)
    ref = h_ref @ w2.T + b2

    assert out.shape == (batch, output_dim)
    assert jnp.allclose(out, ref, atol=1e-4, rtol=1e-5)

    print("KERNEL_OK")
</pallas_src>

<mosaic_0001>
module attributes {stable_mosaic.version = 11 : i64} {
  func.func @_mlp_kernel(%arg0: i32, %arg1: memref<16x128xf32, #tpu.memory_space<vmem>>, %arg2: memref<128x128xf32, #tpu.memory_space<vmem>>, %arg3: memref<1x128xf32, #tpu.memory_space<vmem>>, %arg4: memref<128x128xf32, #tpu.memory_space<vmem>>, %arg5: memref<1x128xf32, #tpu.memory_space<vmem>>, %arg6: memref<16x128xf32, #tpu.memory_space<vmem>>) attributes {dimension_semantics = [#tpu.dimension_semantics<parallel>], iteration_bounds = array<i64: 2>, scalar_prefetch = 0 : i64, scratch_operands = 0 : i64, tpu.core_type = #tpu.core_type<tc>, window_params = [{transform_indices = @transform_0, window_bounds = array<i64: 16, 128>}, {pipeline_mode = #tpu.pipeline_mode<synchronous>, transform_indices = @transform_1, window_bounds = array<i64: 128, 128>}, {pipeline_mode = #tpu.pipeline_mode<synchronous>, transform_indices = @transform_2, window_bounds = array<i64: 1, 128>}, {pipeline_mode = #tpu.pipeline_mode<synchronous>, transform_indices = @transform_3, window_bounds = array<i64: 128, 128>}, {pipeline_mode = #tpu.pipeline_mode<synchronous>, transform_indices = @transform_4, window_bounds = array<i64: 1, 128>}, {transform_indices = @transform_5, window_bounds = array<i64: 16, 128>}]} {
    %c0 = arith.constant 0 : index
    %c0_0 = arith.constant 0 : index
    %0 = vector.load %arg1[%c0, %c0_0] : memref<16x128xf32, #tpu.memory_space<vmem>>, vector<16x128xf32>
    %c0_1 = arith.constant 0 : index
    %c0_2 = arith.constant 0 : index
    %1 = vector.load %arg2[%c0_1, %c0_2] : memref<128x128xf32, #tpu.memory_space<vmem>>, vector<128x128xf32>
    %cst = arith.constant dense<0.000000e+00> : vector<16x128xf32>
    %2 = tpu.matmul %0, %1, %cst {dimension_numbers = #tpu.dot_dimension_numbers<[1], [1], [0], [0], [0, 0, 1, 0], [], []>} : vector<16x128xf32>, vector<128x128xf32>, vector<16x128xf32> -> vector<16x128xf32>
    %c0_3 = arith.constant 0 : index
    %c0_4 = arith.constant 0 : index
    %3 = vector.load %arg3[%c0_3, %c0_4] : memref<1x128xf32, #tpu.memory_space<vmem>>, vector<1x128xf32>
    %4 = vector.broadcast %3 : vector<1x128xf32> to vector<16x128xf32>
    %5 = arith.addf %2, %4 : vector<16x128xf32>
    %cst_5 = arith.constant 0.000000e+00 : f32
    %6 = vector.broadcast %cst_5 : f32 to vector<16x128xf32>
    %7 = arith.cmpf ogt, %5, %6 : vector<16x128xf32>
    %cst_6 = arith.constant 2.000000e-01 : f32
    %8 = vector.broadcast %cst_6 : f32 to vector<16x128xf32>
    %9 = arith.mulf %8, %5 : vector<16x128xf32>
    %10 = arith.select %7, %5, %9 : vector<16x128xi1>, vector<16x128xf32>
    %c0_7 = arith.constant 0 : index
    %c0_8 = arith.constant 0 : index
    %11 = vector.load %arg4[%c0_7, %c0_8] : memref<128x128xf32, #tpu.memory_space<vmem>>, vector<128x128xf32>
    %cst_9 = arith.constant dense<0.000000e+00> : vector<16x128xf32>
    %12 = tpu.matmul %10, %11, %cst_9 {dimension_numbers = #tpu.dot_dimension_numbers<[1], [1], [0], [0], [0, 0, 1, 0], [], []>} : vector<16x128xf32>, vector<128x128xf32>, vector<16x128xf32> -> vector<16x128xf32>
    %c0_10 = arith.constant 0 : index
    %c0_11 = arith.constant 0 : index
    %13 = vector.load %arg5[%c0_10, %c0_11] : memref<1x128xf32, #tpu.memory_space<vmem>>, vector<1x128xf32>
    %14 = vector.broadcast %13 : vector<1x128xf32> to vector<16x128xf32>
    %15 = arith.addf %12, %14 : vector<16x128xf32>
    %c0_12 = arith.constant 0 : index
    %c0_13 = arith.constant 0 : index
    %16 = vector.load %arg6[%c0_12, %c0_13] : memref<16x128xf32, #tpu.memory_space<vmem>>, vector<16x128xf32>
    tpu.vector_store %arg6[%c0_12, %c0_13], %15 {strides = array<i32>} : memref<16x128xf32, #tpu.memory_space<vmem>>, vector<16x128xf32>,
    return
  }
  func.func @transform_0(%arg0: i32) -> (i32, i32) {
    %c0_i32 = arith.constant 0 : i32
    %c0_i32_0 = arith.constant 0 : i32
    return %arg0, %c0_i32 : i32, i32
  }
  func.func @transform_1(%arg0: i32) -> (i32, i32) {
    %c0_i32 = arith.constant 0 : i32
    %c0_i32_0 = arith.constant 0 : i32
    %c0_i32_1 = arith.constant 0 : i32
    return %c0_i32, %c0_i32_0 : i32, i32
  }
  func.func @transform_2(%arg0: i32) -> (i32, i32) {
    %c0_i32 = arith.constant 0 : i32
    %c0_i32_0 = arith.constant 0 : i32
    %c0_i32_1 = arith.constant 0 : i32
    return %c0_i32, %c0_i32_0 : i32, i32
  }
  func.func @transform_3(%arg0: i32) -> (i32, i32) {
    %c0_i32 = arith.constant 0 : i32
    %c0_i32_0 = arith.constant 0 : i32
    %c0_i32_1 = arith.constant 0 : i32
    return %c0_i32, %c0_i32_0 : i32, i32
  }
  func.func @transform_4(%arg0: i32) -> (i32, i32) {
    %c0_i32 = arith.constant 0 : i32
    %c0_i32_0 = arith.constant 0 : i32
    %c0_i32_1 = arith.constant 0 : i32
    return %c0_i32, %c0_i32_0 : i32, i32
  }
  func.func @transform_5(%arg0: i32) -> (i32, i32) {
    %c0_i32 = arith.constant 0 : i32
    %c0_i32_0 = arith.constant 0 : i32
    return %arg0, %c0_i32 : i32, i32
  }
}

</mosaic_0001>

<llo_original>
// kernel: tpu_custom_call.1
$region0: #{tpu_custom_call.1}
  #allocation0 [shape = 'u32[]', space=smem, size = 0x4, offset = 0x4, fixed_abs, tag = 'smem constant byte address 0x4 - core index']
  #allocation1 [shape = 'u32[72,128]{1,0:T(1,128)}', space=vmem, size = 0x9000, scoped, tag = 'internal scratch']
  %s0 = inlined_call_operand.hbm [shape: f32[32,128], index: 0, kind: input, shape index: {}]
  %s1 = inlined_call_operand.hbm [shape: f32[128,128], index: 1, kind: input, shape index: {}]
  %s2 = inlined_call_operand.vmem [shape: f32[1,128], index: 2, kind: input, shape index: {}]
  %s3 = inlined_call_operand.hbm [shape: f32[128,128], index: 3, kind: input, shape index: {}]
  %s4 = inlined_call_operand.vmem [shape: f32[1,128], index: 4, kind: input, shape index: {}]
  %s5 = inlined_call_operand.hbm [shape: f32[32,128], index: 5, kind: output, shape index: {}]
  %s6 = sld [smem:[#allocation0]]
  $region65: #{tpu_custom_call.1} parent=0
    _
  %s8 = ssub.s32 1, %s6
  %s9 = scalar_select 0, %s8, %s6
  $region1: #{tpu_custom_call.1} parent=0
    #allocation2 [shape = 'u8[16384]{0}', space=vmem, size = 0x4000, scoped, tag = 'input window, operand 0']
    #allocation3 [shape = 's32[2]{0}', space=sflag, size = 0x8, scoped, tag = 'scoped memory for tpu_custom_call.1']
    #allocation4 [shape = 's32[2]{0}', space=sflag, size = 0x8, scoped, tag = 'scoped memory for tpu_custom_call.1']
    #allocation5 [shape = 'u8[65536]{0}', space=vmem, size = 0x10000, scoped, tag = 'input window, operand 1, single buffered']
    #allocation6 [shape = 's32[1]{0}', space=sflag, size = 0x4, scoped, tag = 'scoped memory for tpu_custom_call.1']
    #allocation7 [shape = 'u8[65536]{0}', space=vmem, size = 0x10000, scoped, tag = 'input window, operand 3, single buffered']
    #allocation8 [shape = 'u8[16384]{0}', space=vmem, size = 0x4000, scoped, tag = 'output window, operand 0']
    %10 = vsyncpa [#allocation3], 0
    %s11 = scalar_lea.sflag [#allocation3], 1
    %12 = vsyncpa %s11, 0
    %13 = vsyncpa [#allocation6], 0
    %14 = vsyncpa [#allocation4], 0
    %s15 = scalar_lea.sflag [#allocation4], 1
    %16 = vsyncpa %s15, 0
    loop: start=0, step=1, limit=4
    $region2: #{tpu_custom_call.1} parent=1 // loop_pre_header
      _
    $region3: #{tpu_custom_call.1} parent=1 // loop_header
      %s18 = sphi 0, %s22
      %p19 = scmp.ge.s32.totalorder %s18, 4
      %s28 = sphi 0, %s30
      %s31 = sphi 0, %s28
      %s32 = sphi 0, %s31
      %s48 = sphi 0, %s32
      %s52 = sphi 0, %s52
      %s54 = sphi 0, %s52
      %s55 = sphi 0, %s54
      %s69 = sphi 0, %s55
      %s73 = sphi 0, %s73
      %s75 = sphi 0, %s73
      %s76 = sphi 0, %s75
      %s90 = sphi 0, %s76
      %s94 = sphi 0, %s94
      %s96 = sphi 0, %s94
      %s97 = sphi 0, %s96
      %s111 = sphi 0, %s97
      %s115 = sphi 0, %s115
      %s117 = sphi 0, %s115
      %s118 = sphi 0, %s117
      %s132 = sphi 0, %s118
      %s138 = sphi 0, %s140
      %s141 = sphi 0, %s138
      %s142 = sphi 0, %s141
      %s158 = sphi 0, %s142
    $region4: #{tpu_custom_call.1} parent=1 // loop_header_branch
      %21 = sbr.rel (%p19) target = $region8
    $region5: #{tpu_custom_call.1} parent=1 // loop_body
      %s23 = ssub.s32 %s18, 1
      %s24 = ssub.s32 %s18, 2
      %s25 = sadd.s32 %s18, 1
      %s26 = ssub.s32 %s18, %s25
      %p27 = scmp.eq.s32.totalorder %s26, 0
      %s29 = sadd.s32 %s28, 1
      %s30 = scalar_select %p27, %s28, %s29
      %p33 = pneg %p27
      %p34 = scmp.eq.s32.totalorder %s18, 1
      %p35 = por %p33, %p34
      %p36 = scmp.ne.s32.totalorder %s28, %s31
      %p37 = scmp.eq.s32.totalorder %s18, 0
      %p38 = por %p36, %p37
      %p39 = scmp.ne.s32.totalorder %s28, %s31
      %p40 = scmp.eq.s32.totalorder %s23, 1
      %p41 = por %p39, %p40
      %p42 = scmp.ne.s32.totalorder %s31, %s32
      %p43 = scmp.eq.s32.totalorder %s23, 0
      %p44 = por %p42, %p43
      %p45 = scmp.ne.s32.totalorder %s31, %s32
      %p46 = scmp.eq.s32.totalorder %s24, 1
      %p47 = por %p45, %p46
      %p49 = scmp.ne.s32.totalorder %s32, %s48
      %p50 = scmp.eq.s32.totalorder %s24, 0
      %p51 = por %p49, %p50
      %s53 = sadd.s32 %s52, 1
      %p56 = scmp.eq.s32.totalorder %s18, 1
      %p57 = scmp.ne.s32.totalorder %s52, %s54
      %p58 = scmp.eq.s32.totalorder %s18, 0
      %p59 = por %p57, %p58
      %p60 = scmp.ne.s32.totalorder %s52, %s54
      %p61 = scmp.eq.s32.totalorder %s23, 1
      %p62 = por %p60, %p61
      %p63 = scmp.ne.s32.totalorder %s54, %s55
      %p64 = scmp.eq.s32.totalorder %s23, 0
      %p65 = por %p63, %p64
      %p66 = scmp.ne.s32.totalorder %s54, %s55
      %p67 = scmp.eq.s32.totalorder %s24, 1
      %p68 = por %p66, %p67
      %p70 = scmp.ne.s32.totalorder %s55, %s69
      %p71 = scmp.eq.s32.totalorder %s24, 0
      %p72 = por %p70, %p71
      %s74 = sadd.s32 %s73, 1
      %p77 = scmp.eq.s32.totalorder %s18, 1
      %p78 = scmp.ne.s32.totalorder %s73, %s75
      %p79 = scmp.eq.s32.totalorder %s18, 0
      %p80 = por %p78, %p79
      %p81 = scmp.ne.s32.totalorder %s73, %s75
      %p82 = scmp.eq.s32.totalorder %s23, 1
      %p83 = por %p81, %p82
      %p84 = scmp.ne.s32.totalorder %s75, %s76
      %p85 = scmp.eq.s32.totalorder %s23, 0
      %p86 = por %p84, %p85
      %p87 = scmp.ne.s32.totalorder %s75, %s76
      %p88 = scmp.eq.s32.totalorder %s24, 1
      %p89 = por %p87, %p88
      %p91 = scmp.ne.s32.totalorder %s76, %s90
      %p92 = scmp.eq.s32.totalorder %s24, 0
      %p93 = por %p91, %p92
      %s95 = sadd.s32 %s94, 1
      %p98 = scmp.eq.s32.totalorder %s18, 1
      %p99 = scmp.ne.s32.totalorder %s94, %s96
      %p100 = scmp.eq.s32.totalorder %s18, 0
      %p101 = por %p99, %p100
      %p102 = scmp.ne.s32.totalorder %s94, %s96
      %p103 = scmp.eq.s32.totalorder %s23, 1
      %p104 = por %p102, %p103
      %p105 = scmp.ne.s32.totalorder %s96, %s97
      %p106 = scmp.eq.s32.totalorder %s23, 0
      %p107 = por %p105, %p106
      %p108 = scmp.ne.s32.totalorder %s96, %s97
      %p109 = scmp.eq.s32.totalorder %s24, 1
      %p110 = por %p108, %p109
      %p112 = scmp.ne.s32.totalorder %s97, %s111
      %p113 = scmp.eq.s32.totalorder %s24, 0
      %p114 = por %p112, %p113
      %s116 = sadd.s32 %s115, 1
      %p119 = scmp.eq.s32.totalorder %s18, 1
      %p120 = scmp.ne.s32.totalorder %s115, %s117
      %p121 = scmp.eq.s32.totalorder %s18, 0
      %p122 = por %p120, %p121
      %p123 = scmp.ne.s32.totalorder %s115, %s117
      %p124 = scmp.eq.s32.totalorder %s23, 1
      %p125 = por %p123, %p124
      %p126 = scmp.ne.s32.totalorder %s117, %s118
      %p127 = scmp.eq.s32.totalorder %s23, 0
      %p128 = por %p126, %p127
      %p129 = scmp.ne.s32.totalorder %s117, %s118
      %p130 = scmp.eq.s32.totalorder %s24, 1
      %p131 = por %p129, %p130
      %p133 = scmp.ne.s32.totalorder %s118, %s132
      %p134 = scmp.eq.s32.totalorder %s24, 0
      %p135 = por %p133, %p134
      %s136 = ssub.s32 %s18, %s25
      %p137 = scmp.eq.s32.totalorder %s136, 0
      %s139 = sadd.s32 %s138, 1
      %s140 = scalar_select %p137, %s138, %s139
      %p143 = pneg %p137
      %p144 = scmp.eq.s32.totalorder %s18, 1
      %p145 = por %p143, %p144
      %p146 = scmp.ne.s32.totalorder %s138, %s141
      %p147 = scmp.eq.s32.totalorder %s18, 0
      %p148 = por %p146, %p147
      %p149 = scmp.ne.s32.totalorder %s138, %s141
      %p150 = scmp.eq.s32.totalorder %s23, 1
      %p151 = por %p149, %p150
      %p152 = scmp.ne.s32.totalorder %s141, %s142
      %p153 = scmp.eq.s32.totalorder %s23, 0
      %p154 = por %p152, %p153
      %p155 = scmp.ne.s32.totalorder %s141, %s142
      %p156 = scmp.eq.s32.totalorder %s24, 1
      %p157 = por %p155, %p156
      %p159 = scmp.ne.s32.totalorder %s142, %s158
      %p160 = scmp.eq.s32.totalorder %s24, 0
      %p161 = por %p159, %p160
      %p162 = scmp.le.s32.totalorder 1, %s18
      %p163 = scmp.lt.s32.totalorder %s18, 3
      %p164 = pnand %p162, %p163
      %p165 = pneg %p164
      // Predicated region
      $region9: #{tpu_custom_call.1} parent=5 // pred_check
        _
      $region10: #{tpu_custom_call.1} parent=5 // pred_check_branch
        %167 = sbr.rel (%p164) target = $region12
      $region11: #{tpu_custom_call.1} parent=5 // pred_region
        %s168 = ssub.s32 %s18, 1
        // Predicated region
        $region13: #{tpu_custom_call.1} parent=11 // pred_check
          %p169 = pneg %p65
        $region14: #{tpu_custom_call.1} parent=11 // pred_check_branch
          %171 = sbr.rel (%p169) target = $region16
        $region15: #{tpu_custom_call.1} parent=11 // pred_region
          %173 = vsyncadd [#allocation6], 0
          %s174 = sshll.u32 %s1, 4
          %s175 = int_to_ptr.hbm [resolvable:$true] %s174
          %s176 = sshll.u32 [#allocation5], 4
          %s177 = int_to_ptr.vmem [resolvable:$true] %s176
          %182 = dma.hbm_to_vmem [thread:$0]  %s175, 2048, %s177, [#allocation6], 128, 128, 8
        $region16: #{tpu_custom_call.1} parent=11 // pred_fallthru
          _
        // Predicated region
        $region17: #{tpu_custom_call.1} parent=11 // pred_check
          %p183 = pneg %p86
        $region18: #{tpu_custom_call.1} parent=11 // pred_check_branch
          %185 = sbr.rel (%p183) target = $region20
        $region19: #{tpu_custom_call.1} parent=11 // pred_region
          _
        $region20: #{tpu_custom_call.1} parent=11 // pred_fallthru
          _
        // Predicated region
        $region21: #{tpu_custom_call.1} parent=11 // pred_check
          %p186 = pneg %p107
        $region22: #{tpu_custom_call.1} parent=11 // pred_check_branch
          %188 = sbr.rel (%p186) target = $region24
        $region23: #{tpu_custom_call.1} parent=11 // pred_region
          %190 = vsyncadd [#allocation6], 0
          %s191 = sshll.u32 %s3, 4
          %s192 = int_to_ptr.hbm [resolvable:$true] %s191
          %s193 = sshll.u32 [#allocation7], 4
          %s194 = int_to_ptr.vmem [resolvable:$true] %s193
          %199 = dma.hbm_to_vmem [thread:$0]  %s192, 2048, %s194, [#allocation6], 128, 128, 8
        $region24: #{tpu_custom_call.1} parent=11 // pred_fallthru
          _
        // Predicated region
        $region25: #{tpu_custom_call.1} parent=11 // pred_check
          %p200 = pneg %p128
        $region26: #{tpu_custom_call.1} parent=11 // pred_check_branch
          %202 = sbr.rel (%p200) target = $region28
        $region27: #{tpu_custom_call.1} parent=11 // pred_region
          _
        $region28: #{tpu_custom_call.1} parent=11 // pred_fallthru
          _
      $region12: #{tpu_custom_call.1} parent=5 // pred_fallthru
        _
      %p203 = scmp.lt.s32.totalorder %s18, 2
      // Predicated region
      $region29: #{tpu_custom_call.1} parent=5 // pred_check
        %p204 = pneg %p203
      $region30: #{tpu_custom_call.1} parent=5 // pred_check_branch
        %206 = sbr.rel (%p204) target = $region32
      $region31: #{tpu_custom_call.1} parent=5 // pred_region
        // Predicated region
        $region33: #{tpu_custom_call.1} parent=31 // pred_check
          %p207 = pneg %p38
        $region34: #{tpu_custom_call.1} parent=31 // pred_check_branch
          %209 = sbr.rel (%p207) target = $region36
        $region35: #{tpu_custom_call.1} parent=31 // pred_region
          %s210 = sand.u32 %s28, 1
          %s211 = scalar_lea.sflag [#allocation3], %s210
          %s212 = sand.u32 %s28, 1
          %s213 = smul.addr %s212, 16
          %s214 = scalar_lea.vmem [#allocation2], %s213
          %s215 = smul.u32 2, %s18
          %217 = vsyncadd %s211, 0
          %s218 = smul.addr %s215, 8
          %s219 = scalar_lea.hbm %s0, %s218
          %s220 = sshll.u32 %s219, 4
          %s221 = int_to_ptr.hbm [resolvable:$true] %s220
          %s222 = sshll.u32 %s214, 4
          %s223 = int_to_ptr.vmem [resolvable:$true] %s222
          %228 = dma.hbm_to_vmem [thread:$0]  %s221, 256, %s223, %s211, 128, 128, 8
        $region36: #{tpu_custom_call.1} parent=31 // pred_fallthru
          _
      $region32: #{tpu_custom_call.1} parent=5 // pred_fallthru
        _
      %p229 = scmp.le.s32.totalorder 1, %s18
      %p230 = scmp.lt.s32.totalorder %s18, 3
      %p231 = pnand %p229, %p230
      %p232 = pneg %p231
      // Predicated region
      $region37: #{tpu_custom_call.1} parent=5 // pred_check
        _
      $region38: #{tpu_custom_call.1} parent=5 // pred_check_branch
        %234 = sbr.rel (%p231) target = $region40
      $region39: #{tpu_custom_call.1} parent=5 // pred_region
        %s235 = ssub.s32 %s18, 1
        %s236 = sand.u32 %s31, 1
        %s237 = scalar_lea.sflag [#allocation3], %s236
        %s238 = sand.u32 %s31, 1
        %s239 = smul.addr %s238, 16
        %s240 = scalar_lea.vmem [#allocation2], %s239
        // Predicated region
        $region41: #{tpu_custom_call.1} parent=39 // pred_check
          %p241 = pneg %p44
        $region42: #{tpu_custom_call.1} parent=39 // pred_check_branch
          %243 = sbr.rel (%p241) target = $region44
        $region43: #{tpu_custom_call.1} parent=39 // pred_region
          %245 = dma.done %s237, 256
        $region44: #{tpu_custom_call.1} parent=39 // pred_fallthru
          _
        // Predicated region
        $region45: #{tpu_custom_call.1} parent=39 // pred_check
          %p246 = pneg %p65
        $region46: #{tpu_custom_call.1} parent=39 // pred_check_branch
          %248 = sbr.rel (%p246) target = $region48
        $region47: #{tpu_custom_call.1} parent=39 // pred_region
          %250 = dma.done [#allocation6], 2048
        $region48: #{tpu_custom_call.1} parent=39 // pred_fallthru
          _
        // Predicated region
        $region49: #{tpu_custom_call.1} parent=39 // pred_check
          %p251 = pneg %p107
        $region50: #{tpu_custom_call.1} parent=39 // pred_check_branch
          %253 = sbr.rel (%p251) target = $region52
        $region51: #{tpu_custom_call.1} parent=39 // pred_region
          %255 = dma.done [#allocation6], 2048
        $region52: #{tpu_custom_call.1} parent=39 // pred_fallthru
          _
        %s256 = sand.u32 %s31, 1
        %s257 = scalar_lea.sflag [#allocation3], %s256
        %s258 = sand.u32 %s31, 1
        %s259 = smul.addr %s258, 16
        %s260 = scalar_lea.vmem [#allocation2], %s259
        %p261 = pneg %p44
        %p262 = pneg %p41
        %p263 = pneg %p65
        %p264 = pneg %p62
        %p265 = pneg %p86
        %p266 = pneg %p83
        %p267 = pneg %p107
        %p268 = pneg %p104
        %p269 = pneg %p128
        %p270 = pneg %p125
        %p271 = pneg %p154
        %p272 = pneg %p151
        %s273 = sand.u32 %s141, 1
        %s274 = scalar_lea.sflag [#allocation4], %s273
        %s275 = sand.u32 %s141, 1
        %s276 = smul.addr %s275, 16
        %s277 = scalar_lea.vmem [#allocation8], %s276
        %s278 = smul.u32 2, %s23
        %s279 = smul.u32 2, %s23
        %v280 = vld [vmem:[%s240] sm:$0xff]
        %v281 = vld [vmem:[%s240 + $0x8] sm:$0xff]
        %v282 = vld [vmem:[#allocation5] sm:$0xff]
        %v283 = vld [vmem:[#allocation5 + $0x8] sm:$0xff]
        %v284 = vld [vmem:[#allocation5 + $0x10] sm:$0xff]
        %v285 = vld [vmem:[#allocation5 + $0x18] sm:$0xff]
        %v286 = vld [vmem:[#allocation5 + $0x20] sm:$0xff]
        %v287 = vld [vmem:[#allocation5 + $0x28] sm:$0xff]
        %v288 = vld [vmem:[#allocation5 + $0x30] sm:$0xff]
        %v289 = vld [vmem:[#allocation5 + $0x38] sm:$0xff]
        %v290 = vld [vmem:[#allocation5 + $0x40] sm:$0xff]
        %v291 = vld [vmem:[#allocation5 + $0x48] sm:$0xff]
        %v292 = vld [vmem:[#allocation5 + $0x50] sm:$0xff]
        %v293 = vld [vmem:[#allocation5 + $0x58] sm:$0xff]
        %v294 = vld [vmem:[#allocation5 + $0x60] sm:$0xff]
        %v295 = vld [vmem:[#allocation5 + $0x68] sm:$0xff]
        %v296 = vld [vmem:[#allocation5 + $0x70] sm:$0xff]
        %v297 = vld [vmem:[#allocation5 + $0x78] sm:$0xff]
        %v298 = vld [vmem:[%s2] sm:$0x1]
        %v300 = vperm.slane %v298, 0
        %302 = vmatpush.xpose.msra.mxu0 %v297
        %303 = vmatpush.xpose.msra.mxu0 %v296
        %304 = vmatpush.xpose.msra.mxu0 %v295
        %305 = vmatpush.xpose.msra.mxu0 %v294
        %306 = vmatpush.xpose.msra.mxu0 %v293
        %307 = vmatpush.xpose.msra.mxu0 %v292
        %308 = vmatpush.xpose.msra.mxu0 %v291
        %309 = vmatpush.xpose.msra.mxu0 %v290
        %310 = vmatpush.xpose.msra.mxu0 %v289
        %311 = vmatpush.xpose.msra.mxu0 %v288
        %312 = vmatpush.xpose.msra.mxu0 %v287
        %313 = vmatpush.xpose.msra.mxu0 %v286
        %314 = vmatpush.xpose.msra.mxu0 %v285
        %315 = vmatpush.xpose.msra.mxu0 %v284
        %316 = vmatpush.xpose.msra.mxu0 %v283
        %317 = vmatpush.xpose.msra.mxu0 %v282
        %318 = vmatmul.f32.gmra.mxu0 %v280
        %v319 = vpop.f32.mrf.mxu0
        %v320 = vadd.f32 %v300, %v319
        %321 = vmatmul.f32.gmra.mxu0 %v281
        %v322 = vpop.f32.mrf.mxu0
        %v323 = vadd.f32 %v300, %v322
        %324 = vdwg.mxu0
        %vm325 = vcmp.gt.f32.partialorder %v320, 0.0
        %vm326 = vcmp.gt.f32.partialorder %v323, 0.0
        %v327 = vmul.f32 %v320, 0.2
        %v328 = vmul.f32 %v323, 0.2
        %v329 = vsel %vm325, %v320, %v327
        %v330 = vsel %vm326, %v323, %v328
        %v331 = vld [vmem:[#allocation7] sm:$0xff]
        %v332 = vld [vmem:[#allocation7 + $0x8] sm:$0xff]
        %v333 = vld [vmem:[#allocation7 + $0x10] sm:$0xff]
        %v334 = vld [vmem:[#allocation7 + $0x18] sm:$0xff]
        %v335 = vld [vmem:[#allocation7 + $0x20] sm:$0xff]
        %v336 = vld [vmem:[#allocation7 + $0x28] sm:$0xff]
        %v337 = vld [vmem:[#allocation7 + $0x30] sm:$0xff]
        %v338 = vld [vmem:[#allocation7 + $0x38] sm:$0xff]
        %v339 = vld [vmem:[#allocation7 + $0x40] sm:$0xff]
        %v340 = vld [vmem:[#allocation7 + $0x48] sm:$0xff]
        %v341 = vld [vmem:[#allocation7 + $0x50] sm:$0xff]
        %v342 = vld [vmem:[#allocation7 + $0x58] sm:$0xff]
        %v343 = vld [vmem:[#allocation7 + $0x60] sm:$0xff]
        %v344 = vld [vmem:[#allocation7 + $0x68] sm:$0xff]
        %v345 = vld [vmem:[#allocation7 + $0x70] sm:$0xff]
        %v346 = vld [vmem:[#allocation7 + $0x78] sm:$0xff]
        %v347 = vld [vmem:[%s4] sm:$0x1]
        %v349 = vperm.slane %v347, 0
        %351 = vmatpush.xpose.msra.mxu0 %v346
        %352 = vmatpush.xpose.msra.mxu0 %v345
        %353 = vmatpush.xpose.msra.mxu0 %v344
        %354 = vmatpush.xpose.msra.mxu0 %v343
        %355 = vmatpush.xpose.msra.mxu0 %v342
        %356 = vmatpush.xpose.msra.mxu0 %v341
        %357 = vmatpush.xpose.msra.mxu0 %v340
        %358 = vmatpush.xpose.msra.mxu0 %v339
        %359 = vmatpush.xpose.msra.mxu0 %v338
        %360 = vmatpush.xpose.msra.mxu0 %v337
        %361 = vmatpush.xpose.msra.mxu0 %v336
        %362 = vmatpush.xpose.msra.mxu0 %v335
        %363 = vmatpush.xpose.msra.mxu0 %v334
        %364 = vmatpush.xpose.msra.mxu0 %v333
        %365 = vmatpush.xpose.msra.mxu0 %v332
        %366 = vmatpush.xpose.msra.mxu0 %v331
        %367 = vmatmul.f32.gmra.mxu0 %v329
        %v368 = vpop.f32.mrf.mxu0
        %v369 = vadd.f32 %v349, %v368
        %370 = vmatmul.f32.gmra.mxu0 %v330
        %v371 = vpop.f32.mrf.mxu0
        %v372 = vadd.f32 %v349, %v371
        %373 = vdwg.mxu0
        %374 = vst [vmem:[%s277] sm:$0xff] %v369
        %375 = vst [vmem:[%s277 + $0x8] sm:$0xff] %v372
        %s376 = sand.u32 %s141, 1
        %s377 = scalar_lea.sflag [#allocation4], %s376
        %s378 = sand.u32 %s141, 1
        %s379 = smul.addr %s378, 16
        %s380 = scalar_lea.vmem [#allocation8], %s379
        // Predicated region
        $region53: #{tpu_custom_call.1} parent=39 // pred_check
          %p381 = pneg %p151
        $region54: #{tpu_custom_call.1} parent=39 // pred_check_branch
          %383 = sbr.rel (%p381) target = $region56
        $region55: #{tpu_custom_call.1} parent=39 // pred_region
          %s384 = smul.u32 2, %s23
          %386 = vsyncadd %s377, 0
          %s387 = smul.addr %s384, 8
          %s388 = scalar_lea.hbm %s5, %s387
          %s389 = sshll.u32 %s380, 4
          %s390 = int_to_ptr.vmem [resolvable:$true] %s389
          %s391 = sshll.u32 %s388, 4
          %s392 = int_to_ptr.hbm [resolvable:$true] %s391
          %397 = dma.vmem_to_hbm [thread:$0]  %s390, 256, %s392, %s377, 128, 128, 8
        $region56: #{tpu_custom_call.1} parent=39 // pred_fallthru
          _
      $region40: #{tpu_custom_call.1} parent=5 // pred_fallthru
        _
      %p398 = scmp.le.s32.totalorder 2, %s18
      // Predicated region
      $region57: #{tpu_custom_call.1} parent=5 // pred_check
        %p399 = pneg %p398
      $region58: #{tpu_custom_call.1} parent=5 // pred_check_branch
        %401 = sbr.rel (%p399) target = $region60
      $region59: #{tpu_custom_call.1} parent=5 // pred_region
        %s402 = ssub.s32 %s18, 2
        // Predicated region
        $region61: #{tpu_custom_call.1} parent=59 // pred_check
          %p403 = pneg %p157
        $region62: #{tpu_custom_call.1} parent=59 // pred_check_branch
          %405 = sbr.rel (%p403) target = $region64
        $region63: #{tpu_custom_call.1} parent=59 // pred_region
          %s406 = sand.u32 %s142, 1
          %s407 = scalar_lea.sflag [#allocation4], %s406
          %s408 = sand.u32 %s142, 1
          %s409 = smul.addr %s408, 16
          %s410 = scalar_lea.vmem [#allocation8], %s409
          %412 = dma.done %s407, 256
        $region64: #{tpu_custom_call.1} parent=59 // pred_fallthru
          _
      $region60: #{tpu_custom_call.1} parent=5 // pred_fallthru
        _
    $region6: #{tpu_custom_call.1} parent=1 // loop_footer
      %s22 = sadd.s32 1, %s18
    $region7: #{tpu_custom_call.1} parent=1 // loop_footer_branch
      %17 = sbr.rel target = $region3
    $region8: #{tpu_custom_call.1} parent=1 // loop_exit
      _
    %413 = vsyncpa [#allocation3], 1
    %s414 = scalar_lea.sflag [#allocation3], 1
    %415 = vsyncpa %s414, 1
    %416 = vsyncpa [#allocation6], 1
    %417 = vsyncpa [#allocation4], 1
    %s418 = scalar_lea.sflag [#allocation4], 1
    %419 = vsyncpa %s418, 1

</llo_original>
